<compile_context>
chip_gen: v7x
topology: tpu7x:2x2x1
jax: 0.10.0
libtpu: 0.0.40
codegen_flags: <defaults>
</compile_context>

<pallas_src>
import jax
import jax.numpy as jnp
from jax.experimental import pallas as pl
from jax.experimental.pallas import tpu as pltpu


# ----------------------------- kernel bodies ------------------------------

def _shortnet_compute(x_ref, w1t_ref, b1_ref, w2m_ref, w2s_ref, b2_ref,
                      w3h1_ref, w3x_ref, w3h2_ref, b3_ref):
    x = x_ref[...]                                   # (2, T)  lane-dense batch
    cx = x[0:1, :]                                   # (1, T)
    cy = x[1:2, :]                                   # (1, T)

    # --- linear1 + tanh: in_features == 2 -> two rank-1 VPU broadcasts ---
    w1t = w1t_ref[...]                               # (H, 2)
    h1 = jnp.tanh(w1t[:, 0:1] * cx + w1t[:, 1:2] * cy + b1_ref[...])   # (H, T)

    # --- linear2 + tanh on cat([h1, x]) ---
    # (H, H) @ (H, T) MXU matmul plus two rank-1 VPU terms for the skip
    # features (avoids materializing an (H+2, T) concat copy).
    z2 = jnp.dot(w2m_ref[...], h1, preferred_element_type=jnp.float32)
    w2s = w2s_ref[...]                               # (H, 2)
    z2 = z2 + w2s[:, 0:1] * cx + w2s[:, 1:2] * cy + b2_ref[...]
    h2 = jnp.tanh(z2)                                # (H, T)

    # --- linear3 + sigmoid on cat([h1, x, h2]), out_features == 1 ---
    # VPU multiply + sublane (XLU) reduce; a (2H+2)x1 MXU dot would waste the
    # matrix unit and pay result-FIFO latency for <1% utilization.
    w3x = w3x_ref[...]                               # (2, 1)
    z3 = jnp.sum(w3h1_ref[...] * h1, axis=0, keepdims=True)            # (1, T)
    z3 = z3 + w3x[0:1, :] * cx + w3x[1:2, :] * cy
    z3 = z3 + jnp.sum(w3h2_ref[...] * h2, axis=0, keepdims=True)
    z3 = z3 + b3_ref[0, 0]                           # scalar bias from SMEM
    return jax.nn.sigmoid(z3), h1, h2                # out (1, T), h1/h2 (H, T)


def shortnet_kernel_full(x_ref, w1t_ref, b1_ref, w2m_ref, w2s_ref, b2_ref,
                         w3h1_ref, w3x_ref, w3h2_ref, b3_ref,
                         out_ref, hid1_ref, hid2_ref):
    out, h1, h2 = _shortnet_compute(x_ref, w1t_ref, b1_ref, w2m_ref, w2s_ref,
                                    b2_ref, w3h1_ref, w3x_ref, w3h2_ref, b3_ref)
    out_ref[...] = out
    hid1_ref[...] = h1.astype(hid1_ref.dtype)        # mirrors self.hid1
    hid2_ref[...] = h2.astype(hid2_ref.dtype)        # mirrors self.hid2


def shortnet_kernel_out_only(x_ref, w1t_ref, b1_ref, w2m_ref, w2s_ref, b2_ref,
                             w3h1_ref, w3x_ref, w3h2_ref, b3_ref, out_ref):
    out, _, _ = _shortnet_compute(x_ref, w1t_ref, b1_ref, w2m_ref, w2s_ref,
                                  b2_ref, w3h1_ref, w3x_ref, w3h2_ref, b3_ref)
    out_ref[...] = out


# ------------------------------- wrapper ----------------------------------

def _choose_tile_n(n):
    """Pick the lane-dense batch tile (multiple of 128).

    Large enough to amortize the ~0.35 us per-grid-step pipeline overhead,
    capped at 8192 lanes so double-buffered VMEM stays a few MB, and chosen so
    that non-tiny batches still give >= 2 grid steps (v7x megacore sharding).
    """
    n128 = pl.cdiv(n, 128) * 128
    half = (n128 // 256) * 128          # largest 128-multiple <= n128 / 2
    if half == 0:
        return n128                      # tiny batch: single tile
    return min(8192, half)


def shortnet_forward(x, w1, b1, w2, b2, w3, b3, *, tile_n=None,
                     return_hidden=True, hidden_dtype=jnp.float32):
    """x: (N, 2); w1: (2,H); b1: (H,); w2: (H+2,H); b2: (H,); w3: (2H+2,1); b3: (1,).

    Weights follow the y = x @ W + b convention (transpose of nn.Linear.weight).
    Returns:
      return_hidden=True  -> (out (N,1), hid1 (H,N), hid2 (H,N))  [feature-major
                              hiddens: avoids an extra HBM transpose pass]
      return_hidden=False -> out (N,1)   [drops ~98% of HBM writeback]
    """
    n, in_dim = x.shape
    assert in_dim == 2
    num_hid = w1.shape[1]
    f32 = jnp.float32

    if tile_n is None:
        tile_n = _choose_tile_n(n)
    assert tile_n % 128 == 0

    # Pad batch to a multiple of tile_n (zero rows -> finite values, sliced off).
    n_pad = pl.cdiv(n, tile_n) * tile_n
    x_p = jnp.pad(x.astype(f32), ((0, n_pad - n), (0, 0)))
    x_t = x_p.T                                       # (2, Np), batch on lanes

    # Pre-split weights wrapper-side (free at trace time) so the kernel never
    # slices at tile-unaligned offsets.
    w1t = w1.T.astype(f32)                            # (H, 2)
    b1c = b1.reshape(num_hid, 1).astype(f32)          # (H, 1)
    w2t = w2.T.astype(f32)                            # (H, H+2)
    w2m = w2t[:, :num_hid]                            # (H, H)   MXU block
    w2s = w2t[:, num_hid:]                            # (H, 2)   skip features
    b2c = b2.reshape(num_hid, 1).astype(f32)          # (H, 1)
    w3f = w3.reshape(2 * num_hid + 2).astype(f32)
    w3h1 = w3f[:num_hid].reshape(num_hid, 1)          # (H, 1)
    w3x = w3f[num_hid:num_hid + 2].reshape(2, 1)      # (2, 1)
    w3h2 = w3f[num_hid + 2:].reshape(num_hid, 1)      # (H, 1)
    b3s = b3.reshape(1, 1).astype(f32)                # scalar -> SMEM

    grid = (n_pad // tile_n,)

    def resident(shape):
        # Grid-invariant weight/bias: constant index_map -> stays resident in
        # VMEM for the whole grid (no per-step HBM traffic).
        return pl.BlockSpec(shape, lambda i: (0, 0))

    in_specs = [
        pl.BlockSpec((2, tile_n), lambda i: (0, i)),        # x (streamed)
        resident((num_hid, 2)),                             # w1^T
        resident((num_hid, 1)),                             # b1
        resident((num_hid, num_hid)),                       # w2 main (MXU)
        resident((num_hid, 2)),                             # w2 skip
        resident((num_hid, 1)),                             # b2
        resident((num_hid, 1)),                             # w3 (h1 part)
        resident((2, 1)),                                   # w3 (x part)
        resident((num_hid, 1)),                             # w3 (h2 part)
        pl.BlockSpec(memory_space=pltpu.MemorySpace.SMEM),  # b3 scalar
    ]
    args = (x_t, w1t, b1c, w2m, w2s, b2c, w3h1, w3x, w3h2, b3s)
    cparams = pltpu.CompilerParams(
        dimension_semantics=("parallel",),   # megacore on v7x, no-op elsewhere
    )

    if return_hidden:
        out_t, hid1_t, hid2_t = pl.pallas_call(
            shortnet_kernel_full,
            out_shape=(
                jax.ShapeDtypeStruct((1, n_pad), f32),
                jax.ShapeDtypeStruct((num_hid, n_pad), hidden_dtype),
                jax.ShapeDtypeStruct((num_hid, n_pad), hidden_dtype),
            ),
            grid=grid,
            in_specs=in_specs,
            out_specs=(
                pl.BlockSpec((1, tile_n), lambda i: (0, i)),
                pl.BlockSpec((num_hid, tile_n), lambda i: (0, i)),
                pl.BlockSpec((num_hid, tile_n), lambda i: (0, i)),
            ),
            compiler_params=cparams,
        )(*args)
        out = out_t[0, :n, None]                      # (N, 1): slice + expand, no transpose
        # Hiddens stay feature-major (H, N): no extra HBM read+write pass.
        return out, hid1_t[:, :n], hid2_t[:, :n]

    out_t = pl.pallas_call(
        shortnet_kernel_out_only,
        out_shape=jax.ShapeDtypeStruct((1, n_pad), f32),
        grid=grid,
        in_specs=in_specs,
        out_specs=pl.BlockSpec((1, tile_n), lambda i: (0, i)),
        compiler_params=cparams,
    )(*args)
    return out_t[0, :n, None]                         # (N, 1)


# ------------------------- reference + test driver ------------------------

def init_params(key, num_hid):
    """Deterministic init mimicking nn.Linear default U(-1/sqrt(fan_in), +)."""
    ks = jax.random.split(key, 6)

    def linear(kw, kb, fan_in, fan_out):
        bound = 1.0 / jnp.sqrt(float(fan_in))
        w = jax.random.uniform(kw, (fan_in, fan_out), jnp.float32, -bound, bound)
        b = jax.random.uniform(kb, (fan_out,), jnp.float32, -bound, bound)
        return w, b

    w1, b1 = linear(ks[0], ks[1], 2, num_hid)
    w2, b2 = linear(ks[2], ks[3], num_hid + 2, num_hid)
    w3, b3 = linear(ks[4], ks[5], 2 * num_hid + 2, 1)
    return w1, b1, w2, b2, w3, b3


def shortnet_reference(x, w1, b1, w2, b2, w3, b3):
    hp = jax.lax.Precision.HIGHEST
    h1 = jnp.tanh(jnp.dot(x, w1, precision=hp) + b1)
    cat1 = jnp.concatenate([h1, x], axis=1)
    h2 = jnp.tanh(jnp.dot(cat1, w2, precision=hp) + b2)
    cat2 = jnp.concatenate([cat1, h2], axis=1)
    out = jax.nn.sigmoid(jnp.dot(cat2, w3, precision=hp) + b3)
    return out, h1, h2


if __name__ == "__main__":
    N = 8
    NUM_HID = 32

    key = jax.random.PRNGKey(0)
    k_x, k_p = jax.random.split(key)
    x = jax.random.normal(k_x, (N, 2), jnp.float32)
    params = init_params(k_p, NUM_HID)

    # Full variant (also materializes hid1/hid2, feature-major (H, N)).
    out, hid1_fm, hid2_fm = shortnet_forward(x, *params, return_hidden=True)
    out = jax.block_until_ready(out)
    hid1_fm = jax.block_until_ready(hid1_fm)
    hid2_fm = jax.block_until_ready(hid2_fm)

    out_r, h1_r, h2_r = shortnet_reference(x, *params)
    assert out.shape == (N, 1)
    assert hid1_fm.shape == (NUM_HID, N) and hid2_fm.shape == (NUM_HID, N)
    assert jnp.allclose(hid1_fm, h1_r.T, atol=2e-3, rtol=2e-3)
    assert jnp.allclose(hid2_fm, h2_r.T, atol=2e-3, rtol=2e-3)
    assert jnp.allclose(out, out_r, atol=2e-3, rtol=2e-3)

    # Out-only variant (inference path: drops the dominant hid1/hid2 writeback).
    out2 = shortnet_forward(x, *params, return_hidden=False)
    out2 = jax.block_until_ready(out2)
    assert out2.shape == (N, 1)
    assert jnp.allclose(out2, out_r, atol=2e-3, rtol=2e-3)

    print("KERNEL_OK")
</pallas_src>

<mosaic_0001>
module attributes {stable_mosaic.version = 11 : i64} {
  func.func @shortnet_kernel_full(%arg0: i32, %arg1: memref<2x128xf32, #tpu.memory_space<vmem>>, %arg2: memref<32x2xf32, #tpu.memory_space<vmem>>, %arg3: memref<32x1xf32, #tpu.memory_space<vmem>>, %arg4: memref<32x32xf32, #tpu.memory_space<vmem>>, %arg5: memref<32x2xf32, #tpu.memory_space<vmem>>, %arg6: memref<32x1xf32, #tpu.memory_space<vmem>>, %arg7: memref<32x1xf32, #tpu.memory_space<vmem>>, %arg8: memref<2x1xf32, #tpu.memory_space<vmem>>, %arg9: memref<32x1xf32, #tpu.memory_space<vmem>>, %arg10: memref<1x1xf32, #tpu.memory_space<smem>>, %arg11: memref<1x128xf32, #tpu.memory_space<vmem>>, %arg12: memref<32x128xf32, #tpu.memory_space<vmem>>, %arg13: memref<32x128xf32, #tpu.memory_space<vmem>>) attributes {dimension_semantics = [#tpu.dimension_semantics<parallel>], iteration_bounds = array<i64: 1>, scalar_prefetch = 0 : i64, scratch_operands = 0 : i64, tpu.core_type = #tpu.core_type<tc>, window_params = [{transform_indices = @transform_0, window_bounds = array<i64: 2, 128>}, {pipeline_mode = #tpu.pipeline_mode<synchronous>, transform_indices = @transform_1, window_bounds = array<i64: 32, 2>}, {pipeline_mode = #tpu.pipeline_mode<synchronous>, transform_indices = @transform_2, window_bounds = array<i64: 32, 1>}, {pipeline_mode = #tpu.pipeline_mode<synchronous>, transform_indices = @transform_3, window_bounds = array<i64: 32, 32>}, {pipeline_mode = #tpu.pipeline_mode<synchronous>, transform_indices = @transform_4, window_bounds = array<i64: 32, 2>}, {pipeline_mode = #tpu.pipeline_mode<synchronous>, transform_indices = @transform_5, window_bounds = array<i64: 32, 1>}, {pipeline_mode = #tpu.pipeline_mode<synchronous>, transform_indices = @transform_6, window_bounds = array<i64: 32, 1>}, {pipeline_mode = #tpu.pipeline_mode<synchronous>, transform_indices = @transform_7, window_bounds = array<i64: 2, 1>}, {pipeline_mode = #tpu.pipeline_mode<synchronous>, transform_indices = @transform_8, window_bounds = array<i64: 32, 1>}, {transform_indices = @transform_9, window_bounds = array<i64: 1, 1>}, {transform_indices = @transform_10, window_bounds = array<i64: 1, 128>}, {transform_indices = @transform_11, window_bounds = array<i64: 32, 128>}, {transform_indices = @transform_12, window_bounds = array<i64: 32, 128>}]} {
    %c0 = arith.constant 0 : index
    %c0_0 = arith.constant 0 : index
    %0 = vector.load %arg1[%c0, %c0_0] : memref<2x128xf32, #tpu.memory_space<vmem>>, vector<2x128xf32>
    %1 = vector.extract_strided_slice %0 {offsets = [0, 0], sizes = [1, 128], strides = [1, 1]} : vector<2x128xf32> to vector<1x128xf32>
    %2 = vector.extract_strided_slice %0 {offsets = [1, 0], sizes = [1, 128], strides = [1, 1]} : vector<2x128xf32> to vector<1x128xf32>
    %c0_1 = arith.constant 0 : index
    %c0_2 = arith.constant 0 : index
    %3 = vector.load %arg2[%c0_1, %c0_2] : memref<32x2xf32, #tpu.memory_space<vmem>>, vector<32x2xf32>
    %4 = vector.extract_strided_slice %3 {offsets = [0, 0], sizes = [32, 1], strides = [1, 1]} : vector<32x2xf32> to vector<32x1xf32>
    %5 = vector.broadcast %4 : vector<32x1xf32> to vector<32x128xf32>
    %6 = vector.broadcast %1 : vector<1x128xf32> to vector<32x128xf32>
    %7 = arith.mulf %5, %6 : vector<32x128xf32>
    %8 = vector.extract_strided_slice %3 {offsets = [0, 1], sizes = [32, 1], strides = [1, 1]} : vector<32x2xf32> to vector<32x1xf32>
    %9 = vector.broadcast %8 : vector<32x1xf32> to vector<32x128xf32>
    %10 = vector.broadcast %2 : vector<1x128xf32> to vector<32x128xf32>
    %11 = arith.mulf %9, %10 : vector<32x128xf32>
    %12 = arith.addf %7, %11 : vector<32x128xf32>
    %c0_3 = arith.constant 0 : index
    %c0_4 = arith.constant 0 : index
    %13 = vector.load %arg3[%c0_3, %c0_4] : memref<32x1xf32, #tpu.memory_space<vmem>>, vector<32x1xf32>
    %14 = vector.broadcast %13 : vector<32x1xf32> to vector<32x128xf32>
    %15 = arith.addf %12, %14 : vector<32x128xf32>
    %16 = math.tanh %15 : vector<32x128xf32>
    %c0_5 = arith.constant 0 : index
    %c0_6 = arith.constant 0 : index
    %17 = vector.load %arg4[%c0_5, %c0_6] : memref<32x32xf32, #tpu.memory_space<vmem>>, vector<32x32xf32>
    %cst = arith.constant dense<0.000000e+00> : vector<32x128xf32>
    %18 = tpu.matmul %17, %16, %cst {dimension_numbers = #tpu.dot_dimension_numbers<[1], [0], [0], [1], [0, 0, 1, 1], [], []>} : vector<32x32xf32>, vector<32x128xf32>, vector<32x128xf32> -> vector<32x128xf32>
    %c0_7 = arith.constant 0 : index
    %c0_8 = arith.constant 0 : index
    %19 = vector.load %arg5[%c0_7, %c0_8] : memref<32x2xf32, #tpu.memory_space<vmem>>, vector<32x2xf32>
    %20 = vector.extract_strided_slice %19 {offsets = [0, 0], sizes = [32, 1], strides = [1, 1]} : vector<32x2xf32> to vector<32x1xf32>
    %21 = vector.broadcast %20 : vector<32x1xf32> to vector<32x128xf32>
    %22 = vector.broadcast %1 : vector<1x128xf32> to vector<32x128xf32>
    %23 = arith.mulf %21, %22 : vector<32x128xf32>
    %24 = arith.addf %18, %23 : vector<32x128xf32>
    %25 = vector.extract_strided_slice %19 {offsets = [0, 1], sizes = [32, 1], strides = [1, 1]} : vector<32x2xf32> to vector<32x1xf32>
    %26 = vector.broadcast %25 : vector<32x1xf32> to vector<32x128xf32>
    %27 = vector.broadcast %2 : vector<1x128xf32> to vector<32x128xf32>
    %28 = arith.mulf %26, %27 : vector<32x128xf32>
    %29 = arith.addf %24, %28 : vector<32x128xf32>
    %c0_9 = arith.constant 0 : index
    %c0_10 = arith.constant 0 : index
    %30 = vector.load %arg6[%c0_9, %c0_10] : memref<32x1xf32, #tpu.memory_space<vmem>>, vector<32x1xf32>
    %31 = vector.broadcast %30 : vector<32x1xf32> to vector<32x128xf32>
    %32 = arith.addf %29, %31 : vector<32x128xf32>
    %33 = math.tanh %32 : vector<32x128xf32>
    %c0_11 = arith.constant 0 : index
    %c0_12 = arith.constant 0 : index
    %34 = vector.load %arg8[%c0_11, %c0_12] : memref<2x1xf32, #tpu.memory_space<vmem>>, vector<2x1xf32>
    %c0_13 = arith.constant 0 : index
    %c0_14 = arith.constant 0 : index
    %35 = vector.load %arg7[%c0_13, %c0_14] : memref<32x1xf32, #tpu.memory_space<vmem>>, vector<32x1xf32>
    %36 = vector.broadcast %35 : vector<32x1xf32> to vector<32x128xf32>
    %37 = arith.mulf %36, %16 : vector<32x128xf32>
    %cst_15 = arith.constant dense<0.000000e+00> : vector<128xf32>
    %38 = vector.multi_reduction <add>, %37, %cst_15 [0] : vector<32x128xf32> to vector<128xf32>
    %39 = vector.shape_cast %38 : vector<128xf32> to vector<1x128xf32>
    %40 = vector.extract_strided_slice %34 {offsets = [0, 0], sizes = [1, 1], strides = [1, 1]} : vector<2x1xf32> to vector<1x1xf32>
    %41 = vector.broadcast %40 : vector<1x1xf32> to vector<1x128xf32>
    %42 = arith.mulf %41, %1 : vector<1x128xf32>
    %43 = arith.addf %39, %42 : vector<1x128xf32>
    %44 = vector.extract_strided_slice %34 {offsets = [1, 0], sizes = [1, 1], strides = [1, 1]} : vector<2x1xf32> to vector<1x1xf32>
    %45 = vector.broadcast %44 : vector<1x1xf32> to vector<1x128xf32>
    %46 = arith.mulf %45, %2 : vector<1x128xf32>
    %47 = arith.addf %43, %46 : vector<1x128xf32>
    %c0_16 = arith.constant 0 : index
    %c0_17 = arith.constant 0 : index
    %48 = vector.load %arg9[%c0_16, %c0_17] : memref<32x1xf32, #tpu.memory_space<vmem>>, vector<32x1xf32>
    %49 = vector.broadcast %48 : vector<32x1xf32> to vector<32x128xf32>
    %50 = arith.mulf %49, %33 : vector<32x128xf32>
    %cst_18 = arith.constant dense<0.000000e+00> : vector<128xf32>
    %51 = vector.multi_reduction <add>, %50, %cst_18 [0] : vector<32x128xf32> to vector<128xf32>
    %52 = vector.shape_cast %51 : vector<128xf32> to vector<1x128xf32>
    %53 = arith.addf %47, %52 : vector<1x128xf32>
    %c0_19 = arith.constant 0 : index
    %c0_20 = arith.constant 0 : index
    %54 = memref.load %arg10[%c0_19, %c0_20] : memref<1x1xf32, #tpu.memory_space<smem>>
    %55 = vector.broadcast %54 : f32 to vector<1x128xf32>
    %56 = arith.addf %53, %55 : vector<1x128xf32>
    %57 = arith.negf %56 : vector<1x128xf32>
    %58 = math.exp %57 : vector<1x128xf32>
    %cst_21 = arith.constant 1.000000e+00 : f32
    %59 = vector.broadcast %cst_21 : f32 to vector<1x128xf32>
    %60 = arith.addf %59, %58 : vector<1x128xf32>
    %61 = arith.divf %59, %60 : vector<1x128xf32>
    %c0_22 = arith.constant 0 : index
    %c0_23 = arith.constant 0 : index
    %62 = vector.load %arg11[%c0_22, %c0_23] : memref<1x128xf32, #tpu.memory_space<vmem>>, vector<1x128xf32>
    tpu.vector_store %arg11[%c0_22, %c0_23], %61 {strides = array<i32>} : memref<1x128xf32, #tpu.memory_space<vmem>>, vector<1x128xf32>,
    %c0_24 = arith.constant 0 : index
    %c0_25 = arith.constant 0 : index
    %63 = vector.load %arg12[%c0_24, %c0_25] : memref<32x128xf32, #tpu.memory_space<vmem>>, vector<32x128xf32>
    tpu.vector_store %arg12[%c0_24, %c0_25], %16 {strides = array<i32>} : memref<32x128xf32, #tpu.memory_space<vmem>>, vector<32x128xf32>,
    %c0_26 = arith.constant 0 : index
    %c0_27 = arith.constant 0 : index
    %64 = vector.load %arg13[%c0_26, %c0_27] : memref<32x128xf32, #tpu.memory_space<vmem>>, vector<32x128xf32>
    tpu.vector_store %arg13[%c0_26, %c0_27], %33 {strides = array<i32>} : memref<32x128xf32, #tpu.memory_space<vmem>>, vector<32x128xf32>,
    return
  }
  func.func @transform_0(%arg0: i32) -> (i32, i32) {
    %c0_i32 = arith.constant 0 : i32
    %c0_i32_0 = arith.constant 0 : i32
    return %c0_i32, %arg0 : i32, i32
  }
  func.func @transform_1(%arg0: i32) -> (i32, i32) {
    %c0_i32 = arith.constant 0 : i32
    %c0_i32_0 = arith.constant 0 : i32
    %c0_i32_1 = arith.constant 0 : i32
    return %c0_i32, %c0_i32_0 : i32, i32
  }
  func.func @transform_2(%arg0: i32) -> (i32, i32) {
    %c0_i32 = arith.constant 0 : i32
    %c0_i32_0 = arith.constant 0 : i32
    %c0_i32_1 = arith.constant 0 : i32
    return %c0_i32, %c0_i32_0 : i32, i32
  }
  func.func @transform_3(%arg0: i32) -> (i32, i32) {
    %c0_i32 = arith.constant 0 : i32
    %c0_i32_0 = arith.constant 0 : i32
    %c0_i32_1 = arith.constant 0 : i32
    return %c0_i32, %c0_i32_0 : i32, i32
  }
  func.func @transform_4(%arg0: i32) -> (i32, i32) {
    %c0_i32 = arith.constant 0 : i32
    %c0_i32_0 = arith.constant 0 : i32
    %c0_i32_1 = arith.constant 0 : i32
    return %c0_i32, %c0_i32_0 : i32, i32
  }
  func.func @transform_5(%arg0: i32) -> (i32, i32) {
    %c0_i32 = arith.constant 0 : i32
    %c0_i32_0 = arith.constant 0 : i32
    %c0_i32_1 = arith.constant 0 : i32
    return %c0_i32, %c0_i32_0 : i32, i32
  }
  func.func @transform_6(%arg0: i32) -> (i32, i32) {
    %c0_i32 = arith.constant 0 : i32
    %c0_i32_0 = arith.constant 0 : i32
    %c0_i32_1 = arith.constant 0 : i32
    return %c0_i32, %c0_i32_0 : i32, i32
  }
  func.func @transform_7(%arg0: i32) -> (i32, i32) {
    %c0_i32 = arith.constant 0 : i32
    %c0_i32_0 = arith.constant 0 : i32
    %c0_i32_1 = arith.constant 0 : i32
    return %c0_i32, %c0_i32_0 : i32, i32
  }
  func.func @transform_8(%arg0: i32) -> (i32, i32) {
    %c0_i32 = arith.constant 0 : i32
    %c0_i32_0 = arith.constant 0 : i32
    %c0_i32_1 = arith.constant 0 : i32
    return %c0_i32, %c0_i32_0 : i32, i32
  }
  func.func @transform_9(%arg0: i32) -> (i32, i32) {
    %c0_i32 = arith.constant 0 : i32
    %c0_i32_0 = arith.constant 0 : i32
    %c0_i32_1 = arith.constant 0 : i32
    return %c0_i32, %c0_i32_0 : i32, i32
  }
  func.func @transform_10(%arg0: i32) -> (i32, i32) {
    %c0_i32 = arith.constant 0 : i32
    %c0_i32_0 = arith.constant 0 : i32
    return %c0_i32, %arg0 : i32, i32
  }
  func.func @transform_11(%arg0: i32) -> (i32, i32) {
    %c0_i32 = arith.constant 0 : i32
    %c0_i32_0 = arith.constant 0 : i32
    return %c0_i32, %arg0 : i32, i32
  }
  func.func @transform_12(%arg0: i32) -> (i32, i32) {
    %c0_i32 = arith.constant 0 : i32
    %c0_i32_0 = arith.constant 0 : i32
    return %c0_i32, %arg0 : i32, i32
  }
}

</mosaic_0001>

<llo_original>
// kernel: tpu_custom_call.1
$region0: #{tpu_custom_call.1}
  #allocation0 [shape = 'u32[]', space=smem, size = 0x4, offset = 0x4, fixed_abs, tag = 'smem constant byte address 0x4 - core index']
  #allocation1 [shape = 'u32[144,128]{1,0:T(1,128)}', space=vmem, size = 0x12000, scoped, tag = 'internal scratch']
  #allocation2 [shape = 'f32[1,1]{1,0:T(1,128)S(6)}', space=smem, size = 0x200, scoped, tag = 'scoped memory for tpu_custom_call.1']
  %s0 = inlined_call_operand.vmem [shape: f32[2,128], index: 0, kind: input, shape index: {}]
  %s1 = inlined_call_operand.vmem [shape: f32[32,2], index: 1, kind: input, shape index: {}]
  %s2 = inlined_call_operand.vmem [shape: f32[32,1], index: 2, kind: input, shape index: {}]
  %s3 = inlined_call_operand.vmem [shape: f32[32,32], index: 3, kind: input, shape index: {}]
  %s4 = inlined_call_operand.vmem [shape: f32[32,2], index: 4, kind: input, shape index: {}]
  %s5 = inlined_call_operand.vmem [shape: f32[32,1], index: 5, kind: input, shape index: {}]
  %s6 = inlined_call_operand.vmem [shape: f32[32,1], index: 6, kind: input, shape index: {}]
  %s7 = inlined_call_operand.vmem [shape: f32[2,1], index: 7, kind: input, shape index: {}]
  %s8 = inlined_call_operand.vmem [shape: f32[32,1], index: 8, kind: input, shape index: {}]
  %s9 = inlined_call_operand.<no memory space> [shape: f32[1,1], index: 9, kind: input, shape index: {}]
  %s10 = inlined_call_operand.hbm [shape: f32[1,128], index: 10, kind: output, shape index: {0}]
  %s11 = inlined_call_operand.hbm [shape: f32[32,128], index: 11, kind: output, shape index: {1}]
  %s12 = inlined_call_operand.hbm [shape: f32[32,128], index: 12, kind: output, shape index: {2}]
  %13 = xla_tuple %s10, %s11, %s12
  %s14 = sld [smem:[#allocation0]]
  $region66: #{tpu_custom_call.1} parent=0
    _
  %s16 = ssub.s32 1, %s14
  %s17 = scalar_select 0, %s16, %s14
  %18 = sst [smem:[#allocation2]] %s9
  $region1: #{tpu_custom_call.1} parent=0
    #allocation3 [shape = 'u8[512]{0}', space=vmem, size = 0x400, scoped, tag = 'output window, operand 0, single buffered']
    #allocation4 [shape = 's32[1]{0}', space=sflag, size = 0x4, scoped, tag = 'scoped memory for tpu_custom_call.1']
    #allocation5 [shape = 'u8[16384]{0}', space=vmem, size = 0x4000, scoped, tag = 'output window, operand 1, single buffered']
    #allocation6 [shape = 's32[1]{0}', space=sflag, size = 0x4, scoped, tag = 'scoped memory for tpu_custom_call.1']
    #allocation7 [shape = 'u8[16384]{0}', space=vmem, size = 0x4000, scoped, tag = 'output window, operand 2, single buffered']
    %19 = vsyncpa [#allocation4], 0
    %20 = vsyncpa [#allocation6], 0
    // Predicated region
    $region2: #{tpu_custom_call.1} parent=1 // pred_check
      _
    $region3: #{tpu_custom_call.1} parent=1 // pred_check_branch
      %22 = sbr.rel (0) target = $region5
    $region4: #{tpu_custom_call.1} parent=1 // pred_region
      _
    $region5: #{tpu_custom_call.1} parent=1 // pred_fallthru
      _
    // Predicated region
    $region6: #{tpu_custom_call.1} parent=1 // pred_check
      _
    $region7: #{tpu_custom_call.1} parent=1 // pred_check_branch
      %24 = sbr.rel (0) target = $region9
    $region8: #{tpu_custom_call.1} parent=1 // pred_region
      _
    $region9: #{tpu_custom_call.1} parent=1 // pred_fallthru
      _
    // Predicated region
    $region10: #{tpu_custom_call.1} parent=1 // pred_check
      _
    $region11: #{tpu_custom_call.1} parent=1 // pred_check_branch
      %26 = sbr.rel (0) target = $region13
    $region12: #{tpu_custom_call.1} parent=1 // pred_region
      _
    $region13: #{tpu_custom_call.1} parent=1 // pred_fallthru
      _
    // Predicated region
    $region14: #{tpu_custom_call.1} parent=1 // pred_check
      _
    $region15: #{tpu_custom_call.1} parent=1 // pred_check_branch
      %28 = sbr.rel (0) target = $region17
    $region16: #{tpu_custom_call.1} parent=1 // pred_region
      _
    $region17: #{tpu_custom_call.1} parent=1 // pred_fallthru
      _
    // Predicated region
    $region18: #{tpu_custom_call.1} parent=1 // pred_check
      _
    $region19: #{tpu_custom_call.1} parent=1 // pred_check_branch
      %30 = sbr.rel (0) target = $region21
    $region20: #{tpu_custom_call.1} parent=1 // pred_region
      _
    $region21: #{tpu_custom_call.1} parent=1 // pred_fallthru
      _
    // Predicated region
    $region22: #{tpu_custom_call.1} parent=1 // pred_check
      _
    $region23: #{tpu_custom_call.1} parent=1 // pred_check_branch
      %32 = sbr.rel (0) target = $region25
    $region24: #{tpu_custom_call.1} parent=1 // pred_region
      _
    $region25: #{tpu_custom_call.1} parent=1 // pred_fallthru
      _
    // Predicated region
    $region26: #{tpu_custom_call.1} parent=1 // pred_check
      _
    $region27: #{tpu_custom_call.1} parent=1 // pred_check_branch
      %34 = sbr.rel (0) target = $region29
    $region28: #{tpu_custom_call.1} parent=1 // pred_region
      _
    $region29: #{tpu_custom_call.1} parent=1 // pred_fallthru
      _
    // Predicated region
    $region30: #{tpu_custom_call.1} parent=1 // pred_check
      _
    $region31: #{tpu_custom_call.1} parent=1 // pred_check_branch
      %36 = sbr.rel (0) target = $region33
    $region32: #{tpu_custom_call.1} parent=1 // pred_region
      _
    $region33: #{tpu_custom_call.1} parent=1 // pred_fallthru
      _
    // Predicated region
    $region34: #{tpu_custom_call.1} parent=1 // pred_check
      _
    $region35: #{tpu_custom_call.1} parent=1 // pred_check_branch
      %38 = sbr.rel (0) target = $region37
    $region36: #{tpu_custom_call.1} parent=1 // pred_region
      _
    $region37: #{tpu_custom_call.1} parent=1 // pred_fallthru
      _
    // Predicated region
    $region38: #{tpu_custom_call.1} parent=1 // pred_check
      _
    $region39: #{tpu_custom_call.1} parent=1 // pred_check_branch
      %40 = sbr.rel (0) target = $region41
    $region40: #{tpu_custom_call.1} parent=1 // pred_region
      _
    $region41: #{tpu_custom_call.1} parent=1 // pred_fallthru
      _
    %v41 = vld [vmem:[%s0] sm:$0x3]
    %v42 = vld [vmem:[%s1] sm:$0xff]
    %v43 = vld [vmem:[%s1 + $0x8] sm:$0xff]
    %v44 = vld [vmem:[%s1 + $0x10] sm:$0xff]
    %v45 = vld [vmem:[%s1 + $0x18] sm:$0xff]
    %47 = vset.pattern.permute.xlu0 0
    %48 = vperm.xlu0 %47, %v42
    %v49 = vpop.permute.xlu0 %48
    %52 = vset.pattern.permute.xlu0 0
    %53 = vperm.xlu0 %52, %v43
    %v54 = vpop.permute.xlu0 %53
    %57 = vset.pattern.permute.xlu0 0
    %58 = vperm.xlu0 %57, %v44
    %v59 = vpop.permute.xlu0 %58
    %62 = vset.pattern.permute.xlu0 0
    %63 = vperm.xlu0 %62, %v45
    %v64 = vpop.permute.xlu0 %63
    %v66 = vlaneseq
    %v67 = vshrl.u32 %v66, 7
    %v68 = vsub.s32 0, %v67
    %v69 = vrot.slane %v41, %v68
    %v70 = vmul.f32 %v49, %v69
    %v71 = vmul.f32 %v54, %v69
    %v72 = vmul.f32 %v59, %v69
    %v73 = vmul.f32 %v64, %v69
    %74 = vset.pattern.permute.xlu0 1
    %75 = vperm.xlu0 %74, %v42
    %v76 = vpop.permute.xlu0 %75
    %78 = vset.pattern.permute.xlu0 1
    %79 = vperm.xlu0 %78, %v43
    %v80 = vpop.permute.xlu0 %79
    %82 = vset.pattern.permute.xlu0 1
    %83 = vperm.xlu0 %82, %v44
    %v84 = vpop.permute.xlu0 %83
    %86 = vset.pattern.permute.xlu0 1
    %87 = vperm.xlu0 %86, %v45
    %v88 = vpop.permute.xlu0 %87
    %v90 = vlaneseq
    %v91 = vshrl.u32 %v90, 7
    %v92 = vsub.s32 1, %v91
    %v93 = vrot.slane %v41, %v92
    %v94 = vmul.f32 %v76, %v93
    %v95 = vmul.f32 %v80, %v93
    %v96 = vmul.f32 %v84, %v93
    %v97 = vmul.f32 %v88, %v93
    %v98 = vadd.f32 %v70, %v94
    %v99 = vadd.f32 %v71, %v95
    %v100 = vadd.f32 %v72, %v96
    %v101 = vadd.f32 %v73, %v97
    %v102 = vld [vmem:[%s2] sm:$0xff]
    %v103 = vld [vmem:[%s2 + $0x8] sm:$0xff]
    %v104 = vld [vmem:[%s2 + $0x10] sm:$0xff]
    %v105 = vld [vmem:[%s2 + $0x18] sm:$0xff]
    %107 = vset.pattern.permute.xlu0 0
    %108 = vperm.xlu0 %107, %v102
    %v109 = vpop.permute.xlu0 %108
    %112 = vset.pattern.permute.xlu0 0
    %113 = vperm.xlu0 %112, %v103
    %v114 = vpop.permute.xlu0 %113
    %117 = vset.pattern.permute.xlu0 0
    %118 = vperm.xlu0 %117, %v104
    %v119 = vpop.permute.xlu0 %118
    %122 = vset.pattern.permute.xlu0 0
    %123 = vperm.xlu0 %122, %v105
    %v124 = vpop.permute.xlu0 %123
    %v126 = vadd.f32 %v98, %v109
    %v127 = vadd.f32 %v99, %v114
    %v128 = vadd.f32 %v100, %v119
    %v129 = vadd.f32 %v101, %v124
    %v130 = vtanh.pop %v126
    %v131 = vtanh.pop %v127
    %v132 = vtanh.pop %v128
    %v133 = vtanh.pop %v129
    %v134 = vld [vmem:[%s3] sm:$0xff]
    %v135 = vld [vmem:[%s3 + $0x8] sm:$0xff]
    %v136 = vld [vmem:[%s3 + $0x10] sm:$0xff]
    %v137 = vld [vmem:[%s3 + $0x18] sm:$0xff]
    %v138 = vld [vmem:[%s4] sm:$0xff]
    %v139 = vld [vmem:[%s4 + $0x8] sm:$0xff]
    %v140 = vld [vmem:[%s4 + $0x10] sm:$0xff]
    %v141 = vld [vmem:[%s4 + $0x18] sm:$0xff]
    %143 = vset.pattern.permute.xlu0 0
    %144 = vperm.xlu0 %143, %v138
    %v145 = vpop.permute.xlu0 %144
    %148 = vset.pattern.permute.xlu0 0
    %149 = vperm.xlu0 %148, %v139
    %v150 = vpop.permute.xlu0 %149
    %153 = vset.pattern.permute.xlu0 0
    %154 = vperm.xlu0 %153, %v140
    %v155 = vpop.permute.xlu0 %154
    %158 = vset.pattern.permute.xlu0 0
    %159 = vperm.xlu0 %158, %v141
    %v160 = vpop.permute.xlu0 %159
    %v162 = vmul.f32 %v145, %v69
    %v163 = vmul.f32 %v150, %v69
    %v164 = vmul.f32 %v155, %v69
    %v165 = vmul.f32 %v160, %v69
    %vm166 = vcmask 261120
    %v168 = vsel %vm166, %v134, 0
    %v171 = vsel %vm166, %v135, 0
    %v174 = vsel %vm166, %v136, 0
    %v177 = vsel %vm166, %v137, 0
    %179 = vmatprep.subr.mxu0 0.0
    %180 = vmatpush1.msra.mxu0 %v130
    %181 = vmatprep.subr.mxu0 0.0
    %182 = vmatpush1.msra.mxu0 %v131
    %183 = vmatprep.subr.mxu0 0.0
    %184 = vmatpush1.msra.mxu0 %v132
    %185 = vmatprep.subr.mxu0 0.0
    %186 = vmatpush1.msra.mxu0 %v133
    %187 = vmatprep.subr.mxu0 0.0
    %188 = vmatpush1.msra.mxu0 0.0
    %189 = vmatprep.subr.mxu0 0.0
    %190 = vmatpush1.msra.mxu0 0.0
    %191 = vmatprep.subr.mxu0 0.0
    %192 = vmatpush1.msra.mxu0 0.0
    %193 = vmatprep.subr.mxu0 0.0
    %194 = vmatpush1.msra.mxu0 0.0
    %195 = vmatprep.subr.mxu0 0.0
    %196 = vmatpush1.msra.mxu0 0.0
    %197 = vmatprep.subr.mxu0 0.0
    %198 = vmatpush1.msra.mxu0 0.0
    %199 = vmatprep.subr.mxu0 0.0
    %200 = vmatpush1.msra.mxu0 0.0
    %201 = vmatprep.subr.mxu0 0.0
    %202 = vmatpush1.msra.mxu0 0.0
    %203 = vmatprep.subr.mxu0 0.0
    %204 = vmatpush1.msra.mxu0 0.0
    %205 = vmatprep.subr.mxu0 0.0
    %206 = vmatpush1.msra.mxu0 0.0
    %207 = vmatprep.subr.mxu0 0.0
    %208 = vmatpush1.msra.mxu0 0.0
    %209 = vmatprep.subr.mxu0 0.0
    %210 = vmatpush1.msra.mxu0 0.0
    %211 = vmatprep.subr.mxu0 0.0
    %212 = vmatpush1.msra.mxu0 0.0
    %213 = vmatprep.subr.mxu0 0.0
    %214 = vmatpush1.msra.mxu0 0.0
    %215 = vmatprep.subr.mxu0 0.0
    %216 = vmatpush1.msra.mxu0 0.0
    %217 = vmatprep.subr.mxu0 0.0
    %218 = vmatpush1.msra.mxu0 0.0
    %219 = vmatprep.subr.mxu0 0.0
    %220 = vmatpush1.msra.mxu0 0.0
    %221 = vmatprep.subr.mxu0 0.0
    %222 = vmatpush1.msra.mxu0 0.0
    %223 = vmatprep.subr.mxu0 0.0
    %224 = vmatpush1.msra.mxu0 0.0
    %225 = vmatprep.subr.mxu0 0.0
    %226 = vmatpush1.msra.mxu0 0.0
    %227 = vmatprep.subr.mxu0 0.0
    %228 = vmatpush1.msra.mxu0 0.0
    %229 = vmatprep.subr.mxu0 0.0
    %230 = vmatpush1.msra.mxu0 0.0
    %231 = vmatprep.subr.mxu0 0.0
    %232 = vmatpush1.msra.mxu0 0.0
    %233 = vmatprep.subr.mxu0 0.0
    %234 = vmatpush1.msra.mxu0 0.0
    %235 = vmatprep.subr.mxu0 0.0
    %236 = vmatpush1.msra.mxu0 0.0
    %237 = vmatprep.subr.mxu0 0.0
    %238 = vmatpush1.msra.mxu0 0.0
    %239 = vmatprep.subr.mxu0 0.0
    %240 = vmatpush1.msra.mxu0 0.0
    %241 = vmatprep.subr.mxu0 0.0
    %242 = vmatpush1.msra.mxu0 0.0
    %243 = vmatprep.mubr.f32.mxu0 0.0
    %244 = vmatmul.mubr.f32.gmra.mrb[0].mxu0 %v168
    %v245 = vpop.f32.mrb[0].mxu0
    %v246 = vadd.f32 %v162, %v245
    %v247 = vpop.f32.mrb[0].mxu0
    %248 = vmatprep.mubr.f32.mxu0 0.0
    %249 = vmatmul.mubr.f32.gmra.mrb[0].mxu0 %v171
    %v250 = vpop.f32.mrb[0].mxu0
    %v251 = vadd.f32 %v163, %v250
    %v252 = vpop.f32.mrb[0].mxu0
    %253 = vmatprep.mubr.f32.mxu0 0.0
    %254 = vmatmul.mubr.f32.gmra.mrb[0].mxu0 %v174
    %v255 = vpop.f32.mrb[0].mxu0
    %v256 = vadd.f32 %v164, %v255
    %v257 = vpop.f32.mrb[0].mxu0
    %258 = vmatprep.mubr.f32.mxu0 0.0
    %259 = vmatmul.mubr.f32.gmra.mrb[0].mxu0 %v177
    %v260 = vpop.f32.mrb[0].mxu0
    %v261 = vadd.f32 %v165, %v260
    %v262 = vpop.f32.mrb[0].mxu0
    %263 = vdwg.mxu0
    %264 = vset.pattern.permute.xlu0 1
    %265 = vperm.xlu0 %264, %v138
    %v266 = vpop.permute.xlu0 %265
    %268 = vset.pattern.permute.xlu0 1
    %269 = vperm.xlu0 %268, %v139
    %v270 = vpop.permute.xlu0 %269
    %272 = vset.pattern.permute.xlu0 1
    %273 = vperm.xlu0 %272, %v140
    %v274 = vpop.permute.xlu0 %273
    %276 = vset.pattern.permute.xlu0 1
    %277 = vperm.xlu0 %276, %v141
    %v278 = vpop.permute.xlu0 %277
    %v280 = vmul.f32 %v266, %v93
    %v281 = vmul.f32 %v270, %v93
    %v282 = vmul.f32 %v274, %v93
    %v283 = vmul.f32 %v278, %v93
    %v284 = vadd.f32 %v246, %v280
    %v285 = vadd.f32 %v251, %v281
    %v286 = vadd.f32 %v256, %v282
    %v287 = vadd.f32 %v261, %v283
    %v288 = vld [vmem:[%s5] sm:$0xff]
    %v289 = vld [vmem:[%s5 + $0x8] sm:$0xff]
    %v290 = vld [vmem:[%s5 + $0x10] sm:$0xff]
    %v291 = vld [vmem:[%s5 + $0x18] sm:$0xff]
    %293 = vset.pattern.permute.xlu0 0
    %294 = vperm.xlu0 %293, %v288
    %v295 = vpop.permute.xlu0 %294
    %298 = vset.pattern.permute.xlu0 0
    %299 = vperm.xlu0 %298, %v289
    %v300 = vpop.permute.xlu0 %299
    %303 = vset.pattern.permute.xlu0 0
    %304 = vperm.xlu0 %303, %v290
    %v305 = vpop.permute.xlu0 %304
    %308 = vset.pattern.permute.xlu0 0
    %309 = vperm.xlu0 %308, %v291
    %v310 = vpop.permute.xlu0 %309
    %v312 = vadd.f32 %v284, %v295
    %v313 = vadd.f32 %v285, %v300
    %v314 = vadd.f32 %v286, %v305
    %v315 = vadd.f32 %v287, %v310
    %v316 = vtanh.pop %v312
    %v317 = vtanh.pop %v313
    %v318 = vtanh.pop %v314
    %v319 = vtanh.pop %v315
    %v320 = vld [vmem:[%s7] sm:$0x3]
    %v321 = vld [vmem:[%s6] sm:$0xff]
    %v322 = vld [vmem:[%s6 + $0x8] sm:$0xff]
    %v323 = vld [vmem:[%s6 + $0x10] sm:$0xff]
    %v324 = vld [vmem:[%s6 + $0x18] sm:$0xff]
    %326 = vset.pattern.permute.xlu0 0
    %327 = vperm.xlu0 %326, %v321
    %v328 = vpop.permute.xlu0 %327
    %331 = vset.pattern.permute.xlu0 0
    %332 = vperm.xlu0 %331, %v322
    %v333 = vpop.permute.xlu0 %332
    %336 = vset.pattern.permute.xlu0 0
    %337 = vperm.xlu0 %336, %v323
    %v338 = vpop.permute.xlu0 %337
    %341 = vset.pattern.permute.xlu0 0
    %342 = vperm.xlu0 %341, %v324
    %v343 = vpop.permute.xlu0 %342
    %v345 = vmul.f32 %v328, %v130
    %v346 = vmul.f32 %v333, %v131
    %v347 = vmul.f32 %v338, %v132
    %v348 = vmul.f32 %v343, %v133
    %v349 = vadd.f32 %v345, %v346
    %v350 = vadd.f32 %v349, %v347
    %v351 = vadd.f32 %v350, %v348
    %v352 = vrot.slane %v351, 4
    %v353 = vadd.f32 %v351, %v352
    %v354 = vrot.slane %v353, 2
    %v355 = vadd.f32 %v353, %v354
    %v356 = vrot.slane %v355, 1
    %v357 = vadd.f32 %v355, %v356
    %359 = vset.pattern.permute.xlu0 0
    %360 = vperm.xlu0 %359, %v320
    %v361 = vpop.permute.xlu0 %360
    %v363 = vmul.f32 %v361, %v41
    %v364 = vadd.f32 %v357, %v363
    %v366 = vrot.slane %v363, 1
    %v368 = vadd.f32 %v364, %v366
    %v369 = vld [vmem:[%s8] sm:$0xff]
    %v370 = vld [vmem:[%s8 + $0x8] sm:$0xff]
    %v371 = vld [vmem:[%s8 + $0x10] sm:$0xff]
    %v372 = vld [vmem:[%s8 + $0x18] sm:$0xff]
    %374 = vset.pattern.permute.xlu0 0
    %375 = vperm.xlu0 %374, %v369
    %v376 = vpop.permute.xlu0 %375
    %379 = vset.pattern.permute.xlu0 0
    %380 = vperm.xlu0 %379, %v370
    %v381 = vpop.permute.xlu0 %380
    %384 = vset.pattern.permute.xlu0 0
    %385 = vperm.xlu0 %384, %v371
    %v386 = vpop.permute.xlu0 %385
    %389 = vset.pattern.permute.xlu0 0
    %390 = vperm.xlu0 %389, %v372
    %v391 = vpop.permute.xlu0 %390
    %v393 = vmul.f32 %v376, %v316
    %v394 = vmul.f32 %v381, %v317
    %v395 = vmul.f32 %v386, %v318
    %v396 = vmul.f32 %v391, %v319
    %v397 = vadd.f32 %v393, %v394
    %v398 = vadd.f32 %v397, %v395
    %v399 = vadd.f32 %v398, %v396
    %v400 = vrot.slane %v399, 4
    %v401 = vadd.f32 %v399, %v400
    %v402 = vrot.slane %v401, 2
    %v403 = vadd.f32 %v401, %v402
    %v404 = vrot.slane %v403, 1
    %v405 = vadd.f32 %v403, %v404
    %v406 = vadd.f32 %v368, %v405
    %s407 = sld [smem:[#allocation2]]
    %v408 = vstv %s407
    %v409 = vadd.f32 %v406, %v408
    %v410 = vxor.u32 %v409, 2147483648
    %v411 = vmul.f32 %v410, 1.442695
    %v412 = vpow.pop %v411
    %v413 = vadd.f32 %v412, 1.0
    %v414 = vrcp.pop %v413
    %v415 = vmul.f32 1.0, %v414
    %416 = vst [vmem:[#allocation3] sm:$0x1] %v415
    %417 = vst [vmem:[#allocation5] sm:$0xff] %v130
    %418 = vst [vmem:[#allocation5 + $0x8] sm:$0xff] %v131
    %419 = vst [vmem:[#allocation5 + $0x10] sm:$0xff] %v132
    %420 = vst [vmem:[#allocation5 + $0x18] sm:$0xff] %v133
    %421 = vst [vmem:[#allocation7] sm:$0xff] %v316
    %422 = vst [vmem:[#allocation7 + $0x8] sm:$0xff] %v317
    %423 = vst [vmem:[#allocation7 + $0x10] sm:$0xff] %v318
    %424 = vst [vmem:[#allocation7 + $0x18] sm:$0xff] %v319
    // Predicated region
    $region42: #{tpu_custom_call.1} parent=1 // pred_check
      _
    $region43: #{tpu_custom_call.1} parent=1 // pred_check_branch
      %426 = sbr.rel (0) target = $region45
    $region44: #{tpu_custom_call.1} parent=1 // pred_region
      %s428 = ssub.s32 16, 16
      %429 = vsyncadd [#allocation4], %s428
      %s431 = sshll.u32 [#allocation3], 4
      %s432 = int_to_ptr.vmem [resolvable:$true] %s431
      %434 = dma.vmem_to_hbm [thread:$0]  %s432, 16, %s10, [#allocation4]
    $region45: #{tpu_custom_call.1} parent=1 // pred_fallthru
      _
    // Predicated region
    $region46: #{tpu_custom_call.1} parent=1 // pred_check
      _
    $region47: #{tpu_custom_call.1} parent=1 // pred_check_branch
      %436 = sbr.rel (0) target = $region49
    $region48: #{tpu_custom_call.1} parent=1 // pred_region
      %s438 = ssub.s32 512, 512
      %439 = vsyncadd [#allocation6], %s438
      %s440 = sshll.u32 [#allocation5], 4
      %s441 = int_to_ptr.vmem [resolvable:$true] %s440
      %446 = dma.vmem_to_hbm [thread:$0]  %s441, 512, %s11, [#allocation6], 128, 128, 8
    $region49: #{tpu_custom_call.1} parent=1 // pred_fallthru
      _
    // Predicated region
    $region50: #{tpu_custom_call.1} parent=1 // pred_check
      _
    $region51: #{tpu_custom_call.1} parent=1 // pred_check_branch
      %448 = sbr.rel (0) target = $region53
    $region52: #{tpu_custom_call.1} parent=1 // pred_region
      %s450 = ssub.s32 512, 512
      %451 = vsyncadd [#allocation6], %s450
      %s452 = sshll.u32 [#allocation7], 4
      %s453 = int_to_ptr.vmem [resolvable:$true] %s452
      %458 = dma.vmem_to_hbm [thread:$0]  %s453, 512, %s12, [#allocation6], 128, 128, 8
    $region53: #{tpu_custom_call.1} parent=1 // pred_fallthru
      _
    // Predicated region
    $region54: #{tpu_custom_call.1} parent=1 // pred_check
      _
    $region55: #{tpu_custom_call.1} parent=1 // pred_check_branch
      %460 = sbr.rel (0) target = $region57
    $region56: #{tpu_custom_call.1} parent=1 // pred_region
      %461 = dma.done [#allocation4], 16
    $region57: #{tpu_custom_call.1} parent=1 // pred_fallthru
      _
    // Predicated region
    $region58: #{tpu_custom_call.1} parent=1 // pred_check
      _
    $region59: #{tpu_custom_call.1} parent=1 // pred_check_branch
      %463 = sbr.rel (0) target = $region61
    $region60: #{tpu_custom_call.1} parent=1 // pred_region
      %464 = dma.done [#allocation6], 512
    $region61: #{tpu_custom_call.1} parent=1 // pred_fallthru
      _
    // Predicated region
    $region62: #{tpu_custom_call.1} parent=1 // pred_check
      _
    $region63: #{tpu_custom_call.1} parent=1 // pred_check_branch
      %466 = sbr.rel (0) target = $region65
    $region64: #{tpu_custom_call.1} parent=1 // pred_region
      %467 = dma.done [#allocation6], 512
    $region65: #{tpu_custom_call.1} parent=1 // pred_fallthru
      _
    %468 = vsyncpa [#allocation4], 1
    %469 = vsyncpa [#allocation6], 1

</llo_original>
